<compile_context>
chip_gen: v6e
topology: v6e:2x2x1
jax: 0.10.0
libtpu: 0.0.40
codegen_flags: <defaults>
</compile_context>

<pallas_src>
import functools

import jax
import jax.numpy as jnp
import numpy as np
from jax.experimental import pallas as pl
from jax.experimental.pallas import tpu as pltpu

KW = 4          # conv kernel size
PADW = 2        # int(ceil((4 - 1) / 2))
EPS = 1e-5      # nn.InstanceNorm2d default eps
SLOPE = 0.2     # LeakyReLU negative slope

VMEM_LIMIT = 64 * 1024 * 1024


def _round_up(x, m):
    return (x + m - 1) // m * m


# ----------------------------------------------------------------------------
# Pallas kernels
# ----------------------------------------------------------------------------
def _conv_stats_kernel(p_ref, w_ref, b_ref, y_ref, sum_ref, sq_ref, *,
                       m_valid, tm):
    """Conv-as-matmul + bias; also emits per-tile channel sum / sumsq.

    p_ref : (1, TM, K)    bf16   im2col patch tile
    w_ref : (K, CoutP)    bf16   flattened conv weight (lane-padded Cout)
    b_ref : (1, CoutP)    f32    bias
    y_ref : (1, TM, CoutP) f32   pre-norm activation tile
    sum_ref/sq_ref : (1, 1, 1, CoutP) f32 partial InstanceNorm statistics
    """
    y = jnp.dot(p_ref[0], w_ref[...], preferred_element_type=jnp.float32)
    y = y + b_ref[...]
    y_ref[0] = y

    # Mask padded spatial rows out of the statistics.
    row = jax.lax.broadcasted_iota(jnp.int32, y.shape, 0) + pl.program_id(1) * tm
    ym = jnp.where(row < m_valid, y, 0.0)
    sum_ref[0, 0] = jnp.sum(ym, axis=0, keepdims=True)
    sq_ref[0, 0] = jnp.sum(ym * ym, axis=0, keepdims=True)


def _conv_fused_kernel(p_ref, w_ref, b_ref, o_ref, *, apply_act):
    """Conv-as-matmul + bias (+ LeakyReLU) for layers without InstanceNorm."""
    y = jnp.dot(p_ref[0], w_ref[...], preferred_element_type=jnp.float32)
    y = y + b_ref[...]
    if apply_act:
        y = jnp.where(y > 0.0, y, SLOPE * y)
    o_ref[0] = y


def _norm_act_kernel(y_ref, mean_ref, inv_ref, o_ref, *, apply_act):
    """Second pass: (y - mean) * rsqrt(var + eps), then LeakyReLU."""
    y = y_ref[0]                               # (TM, CoutP) f32
    yn = (y - mean_ref[0]) * inv_ref[0]        # broadcast (1, CoutP)
    if apply_act:
        yn = jnp.where(yn > 0.0, yn, SLOPE * yn)
    o_ref[0] = yn


# ----------------------------------------------------------------------------
# Plain-JAX glue: padding + im2col (pure data movement / reshapes, bf16).
# ----------------------------------------------------------------------------
def im2col(x_nhwc, stride):
    N, H, W, C = x_nhwc.shape
    xp = jnp.pad(x_nhwc, ((0, 0), (PADW, PADW), (PADW, PADW), (0, 0)))
    OH = (H + 2 * PADW - KW) // stride + 1
    OW = (W + 2 * PADW - KW) // stride + 1
    cols = []
    for i in range(KW):
        for j in range(KW):
            cols.append(
                xp[:, i:i + (OH - 1) * stride + 1:stride,
                      j:j + (OW - 1) * stride + 1:stride, :]
            )
    patches = jnp.stack(cols, axis=3)                     # (N, OH, OW, 16, C)
    return patches.reshape(N, OH * OW, KW * KW * C), OH, OW


# ----------------------------------------------------------------------------
# One discriminator layer: conv + bias [+ InstanceNorm] [+ LeakyReLU]
# ----------------------------------------------------------------------------
def conv_layer(x_nhwc, w_hwio, b, stride, apply_norm, apply_act):
    N = x_nhwc.shape[0]
    Cout = w_hwio.shape[-1]
    CoutP = _round_up(Cout, 128)               # lane-dense output stores

    # bf16 patches (MXU inputs; halves im2col HBM traffic).
    patches, OH, OW = im2col(x_nhwc.astype(jnp.bfloat16), stride)
    M = OH * OW
    K = patches.shape[-1]

    TM = min(_round_up(M, 16), 512)            # spatial tile (VMEM-friendly)
    Mpad = _round_up(M, TM)
    MT = Mpad // TM
    if Mpad != M:
        patches = jnp.pad(patches, ((0, 0), (0, Mpad - M), (0, 0)))

    w_flat = w_hwio.reshape(K, Cout).astype(jnp.bfloat16)
    b_vec = b.astype(jnp.float32)
    if CoutP != Cout:
        w_flat = jnp.pad(w_flat, ((0, 0), (0, CoutP - Cout)))
        b_vec = jnp.pad(b_vec, (0, CoutP - Cout))
    b_row = b_vec.reshape(1, CoutP)

    cost = pl.CostEstimate(
        flops=2 * N * Mpad * K * CoutP,
        transcendentals=0,
        bytes_accessed=(patches.size * 2 + w_flat.size * 2 + b_row.size * 4
                        + N * Mpad * CoutP * 4),
    )
    cparams = pltpu.CompilerParams(
        dimension_semantics=("parallel", "parallel"),
        vmem_limit_bytes=VMEM_LIMIT,
    )

    p_spec = pl.BlockSpec((1, TM, K), lambda n, m: (n, m, 0))
    w_spec = pl.BlockSpec((K, CoutP), lambda n, m: (0, 0))
    b_spec = pl.BlockSpec((1, CoutP), lambda n, m: (0, 0))
    y_spec = pl.BlockSpec((1, TM, CoutP), lambda n, m: (n, m, 0))

    if apply_norm:
        stat_spec = pl.BlockSpec((1, 1, 1, CoutP), lambda n, m: (n, m, 0, 0))
        kernel = functools.partial(_conv_stats_kernel, m_valid=M, tm=TM)
        y, psum, psq = pl.pallas_call(
            kernel,
            out_shape=(
                jax.ShapeDtypeStruct((N, Mpad, CoutP), jnp.float32),
                jax.ShapeDtypeStruct((N, MT, 1, CoutP), jnp.float32),
                jax.ShapeDtypeStruct((N, MT, 1, CoutP), jnp.float32),
            ),
            grid=(N, MT),
            in_specs=[p_spec, w_spec, b_spec],
            out_specs=(y_spec, stat_spec, stat_spec),
            compiler_params=cparams,
            cost_estimate=cost,
        )(patches, w_flat, b_row)

        # Tiny cross-tile combine of the partial statistics (XLA).
        s = jnp.sum(psum, axis=1)                      # (N, 1, CoutP)
        sq = jnp.sum(psq, axis=1)                      # (N, 1, CoutP)
        mean = s / float(M)
        var = jnp.maximum(sq / float(M) - mean * mean, 0.0)
        inv = jax.lax.rsqrt(var + EPS)

        norm_kernel = functools.partial(_norm_act_kernel, apply_act=apply_act)
        out = pl.pallas_call(
            norm_kernel,
            out_shape=jax.ShapeDtypeStruct((N, Mpad, CoutP), jnp.float32),
            grid=(N, MT),
            in_specs=[
                y_spec,
                pl.BlockSpec((1, 1, CoutP), lambda n, m: (n, 0, 0)),
                pl.BlockSpec((1, 1, CoutP), lambda n, m: (n, 0, 0)),
            ],
            out_specs=y_spec,
            compiler_params=cparams,
        )(y, mean, inv)
    else:
        kernel = functools.partial(_conv_fused_kernel, apply_act=apply_act)
        out = pl.pallas_call(
            kernel,
            out_shape=jax.ShapeDtypeStruct((N, Mpad, CoutP), jnp.float32),
            grid=(N, MT),
            in_specs=[p_spec, w_spec, b_spec],
            out_specs=y_spec,
            compiler_params=cparams,
            cost_estimate=cost,
        )(patches, w_flat, b_row)

    # Drop padded spatial rows and padded channels.
    return out[:, :M, :Cout].reshape(N, OH, OW, Cout)


# ----------------------------------------------------------------------------
# Parameter construction (deterministic; mirrors NLayerDiscriminator_noc.__init__)
# ----------------------------------------------------------------------------
def init_params(key, input_nc, ndf=64, n_layers=3):
    chans = [input_nc, ndf]
    nf = ndf
    for _ in range(1, n_layers):
        nf = min(nf * 2, 512)
        chans.append(nf)
    nf = min(nf * 2, 512)
    chans.append(nf)
    chans.append(1)
    strides = [2] * n_layers + [1, 1]

    layers = []
    n_conv = len(chans) - 1
    for li, (cin, cout) in enumerate(zip(chans[:-1], chans[1:])):
        key, k1, k2 = jax.random.split(key, 3)
        bound = 1.0 / np.sqrt(cin * KW * KW)
        w_hwio = jax.random.uniform(k1, (KW, KW, cin, cout), jnp.float32,
                                    -bound, bound)
        b = jax.random.uniform(k2, (cout,), jnp.float32, -bound, bound)
        apply_norm = (0 < li < n_conv - 1)   # no norm on first and last conv
        apply_act = (li < n_conv - 1)        # no activation on last conv
        layers.append((w_hwio, b, strides[li], apply_norm, apply_act))
    return layers


# ----------------------------------------------------------------------------
# Forward pass (Pallas) and pure-JAX f32 reference.
# ----------------------------------------------------------------------------
def forward_pallas(x_nchw, layers):
    x = jnp.transpose(x_nchw, (0, 2, 3, 1))               # NCHW -> NHWC
    for (w_hwio, b, stride, apply_norm, apply_act) in layers:
        x = conv_layer(x, w_hwio, b, stride, apply_norm, apply_act)
    return jnp.transpose(x, (0, 3, 1, 2))                  # NHWC -> NCHW


def forward_reference(x_nchw, layers):
    x = jnp.transpose(x_nchw, (0, 2, 3, 1))
    for (w_hwio, b, stride, apply_norm, apply_act) in layers:
        y = jax.lax.conv_general_dilated(
            x, w_hwio, (stride, stride), [(PADW, PADW), (PADW, PADW)],
            dimension_numbers=("NHWC", "HWIO", "NHWC"))
        y = y + b.reshape(1, 1, 1, -1)
        if apply_norm:
            mean = jnp.mean(y, axis=(1, 2), keepdims=True)
            var = jnp.mean(jnp.square(y - mean), axis=(1, 2), keepdims=True)
            y = (y - mean) * jax.lax.rsqrt(var + EPS)
        if apply_act:
            y = jnp.where(y > 0, y, SLOPE * y)
        x = y
    return jnp.transpose(x, (0, 3, 1, 2))


if __name__ == "__main__":
    key = jax.random.PRNGKey(0)
    k_x, k_p = jax.random.split(key)

    # Small shapes consistent with the module: batch=2, input_nc=4, 16x16 spatial.
    N, C_IN, H, W = 2, 4, 16, 16
    x = jax.random.normal(k_x, (N, C_IN, H, W), jnp.float32)

    layers = init_params(k_p, input_nc=C_IN, ndf=64, n_layers=3)

    out = forward_pallas(x, layers)
    out = jax.block_until_ready(out)

    ref = jax.block_until_ready(forward_reference(x, layers))
    np.testing.assert_allclose(np.asarray(out), np.asarray(ref),
                               atol=5e-2, rtol=5e-2)

    # Expected output spatial: 16 -> 9 -> 5 -> 3 -> 4 -> 5, channels -> 1.
    assert out.shape == (N, 1, 5, 5), out.shape
    print("KERNEL_OK")
</pallas_src>

<mosaic_0001>
module attributes {stable_mosaic.version = 11 : i64} {
  func.func @_conv_fused_kernel(%arg0: i32, %arg1: i32, %arg2: memref<1x96x64xbf16, #tpu.memory_space<vmem>>, %arg3: memref<64x128xbf16, #tpu.memory_space<vmem>>, %arg4: memref<1x128xf32, #tpu.memory_space<vmem>>, %arg5: memref<1x96x128xf32, #tpu.memory_space<vmem>>) attributes {dimension_semantics = [#tpu.dimension_semantics<parallel>, #tpu.dimension_semantics<parallel>], iteration_bounds = array<i64: 2, 1>, scalar_prefetch = 0 : i64, scratch_operands = 0 : i64, tpu.core_type = #tpu.core_type<tc>, window_params = [{transform_indices = @transform_0, window_bounds = array<i64: 1, 96, 64>}, {pipeline_mode = #tpu.pipeline_mode<synchronous>, transform_indices = @transform_1, window_bounds = array<i64: 64, 128>}, {pipeline_mode = #tpu.pipeline_mode<synchronous>, transform_indices = @transform_2, window_bounds = array<i64: 1, 128>}, {transform_indices = @transform_3, window_bounds = array<i64: 1, 96, 128>}]} {
    %c0 = arith.constant 0 : index
    %c0_0 = arith.constant 0 : index
    %c0_1 = arith.constant 0 : index
    %0 = vector.load %arg2[%c0, %c0_0, %c0_1] : memref<1x96x64xbf16, #tpu.memory_space<vmem>>, vector<1x96x64xbf16>
    %1 = vector.shape_cast %0 : vector<1x96x64xbf16> to vector<96x64xbf16>
    %c0_2 = arith.constant 0 : index
    %c0_3 = arith.constant 0 : index
    %2 = vector.load %arg3[%c0_2, %c0_3] : memref<64x128xbf16, #tpu.memory_space<vmem>>, vector<64x128xbf16>
    %cst = arith.constant dense<0.000000e+00> : vector<96x128xf32>
    %3 = tpu.matmul %1, %2, %cst {dimension_numbers = #tpu.dot_dimension_numbers<[1], [0], [0], [1], [0, 0, 1, 1], [], []>} : vector<96x64xbf16>, vector<64x128xbf16>, vector<96x128xf32> -> vector<96x128xf32>
    %c0_4 = arith.constant 0 : index
    %c0_5 = arith.constant 0 : index
    %4 = vector.load %arg4[%c0_4, %c0_5] : memref<1x128xf32, #tpu.memory_space<vmem>>, vector<1x128xf32>
    %5 = vector.broadcast %4 : vector<1x128xf32> to vector<96x128xf32>
    %6 = arith.addf %3, %5 : vector<96x128xf32>
    %cst_6 = arith.constant 0.000000e+00 : f32
    %7 = vector.broadcast %cst_6 : f32 to vector<96x128xf32>
    %8 = arith.cmpf ogt, %6, %7 : vector<96x128xf32>
    %cst_7 = arith.constant 2.000000e-01 : f32
    %9 = vector.broadcast %cst_7 : f32 to vector<96x128xf32>
    %10 = arith.mulf %9, %6 : vector<96x128xf32>
    %11 = arith.select %8, %6, %10 : vector<96x128xi1>, vector<96x128xf32>
    %c0_8 = arith.constant 0 : index
    %c0_9 = arith.constant 0 : index
    %c0_10 = arith.constant 0 : index
    %12 = vector.load %arg5[%c0_8, %c0_9, %c0_10] : memref<1x96x128xf32, #tpu.memory_space<vmem>>, vector<1x96x128xf32>
    %13 = vector.shape_cast %12 : vector<1x96x128xf32> to vector<96x128xf32>
    %14 = vector.shape_cast %11 : vector<96x128xf32> to vector<1x96x128xf32>
    tpu.vector_store %arg5[%c0_8, %c0_9, %c0_10], %14 {strides = array<i32>} : memref<1x96x128xf32, #tpu.memory_space<vmem>>, vector<1x96x128xf32>,
    return
  }
  func.func @transform_0(%arg0: i32, %arg1: i32) -> (i32, i32, i32) {
    %c0_i32 = arith.constant 0 : i32
    %c0_i32_0 = arith.constant 0 : i32
    return %arg0, %arg1, %c0_i32 : i32, i32, i32
  }
  func.func @transform_1(%arg0: i32, %arg1: i32) -> (i32, i32) {
    %c0_i32 = arith.constant 0 : i32
    %c0_i32_0 = arith.constant 0 : i32
    %c0_i32_1 = arith.constant 0 : i32
    return %c0_i32, %c0_i32_0 : i32, i32
  }
  func.func @transform_2(%arg0: i32, %arg1: i32) -> (i32, i32) {
    %c0_i32 = arith.constant 0 : i32
    %c0_i32_0 = arith.constant 0 : i32
    %c0_i32_1 = arith.constant 0 : i32
    return %c0_i32, %c0_i32_0 : i32, i32
  }
  func.func @transform_3(%arg0: i32, %arg1: i32) -> (i32, i32, i32) {
    %c0_i32 = arith.constant 0 : i32
    %c0_i32_0 = arith.constant 0 : i32
    return %arg0, %arg1, %c0_i32 : i32, i32, i32
  }
}

</mosaic_0001>

<llo_original>
// kernel: tpu_custom_call.1
$region0: #{tpu_custom_call.1}
  #allocation0 [shape = 'u32[]', space=smem, size = 0x4, offset = 0x4, fixed_abs, tag = 'smem constant byte address 0x4 - core index']
  #allocation1 [shape = 'u32[144,128]{1,0:T(1,128)}', space=vmem, size = 0x12000, scoped, tag = 'internal scratch']
  %s0 = inlined_call_operand.vmem [shape: bf16[2,96,64], index: 0, kind: input, shape index: {}]
  %s1 = inlined_call_operand.vmem [shape: bf16[64,128], index: 1, kind: input, shape index: {}]
  %s2 = inlined_call_operand.vmem [shape: f32[1,128], index: 2, kind: input, shape index: {}]
  %s3 = inlined_call_operand.hbm [shape: f32[2,96,128], index: 3, kind: output, shape index: {}]
  %s4 = sld [smem:[#allocation0]]
  $region45: #{tpu_custom_call.1} parent=0
    _
  %s6 = ssub.s32 1, %s4
  %s7 = scalar_select 0, %s6, %s4
  $region1: #{tpu_custom_call.1} parent=0
    #allocation2 [shape = 'u8[98304]{0}', space=vmem, size = 0x18000, scoped, tag = 'output window, operand 0']
    #allocation3 [shape = 's32[2]{0}', space=sflag, size = 0x8, scoped, tag = 'scoped memory for tpu_custom_call.1']
    %8 = vsyncpa [#allocation3], 0
    %s9 = scalar_lea.sflag [#allocation3], 1
    %10 = vsyncpa %s9, 0
    loop: start=0, step=1, limit=4
    $region2: #{tpu_custom_call.1} parent=1 // loop_pre_header
      _
    $region3: #{tpu_custom_call.1} parent=1 // loop_header
      %s12 = sphi 0, %s16
      %p13 = scmp.ge.s32.totalorder %s12, 4
      %s19 = sphi 0, %s31
      %s20 = sphi 0, %s27
      %s21 = sphi 0, %s19
      %s22 = sphi 0, %s20
      %s23 = sphi 0, %s21
      %s24 = sphi 0, %s22
      %s36 = sphi 0, %s38
      %s39 = sphi 0, %s36
      %s40 = sphi 0, %s39
      %s56 = sphi 0, %s40
      %s60 = sphi 0, %s60
      %s62 = sphi 0, %s60
      %s63 = sphi 0, %s62
      %s77 = sphi 0, %s63
      %s81 = sphi 0, %s81
      %s83 = sphi 0, %s81
      %s84 = sphi 0, %s83
      %s98 = sphi 0, %s84
      %s106 = sphi 0, %s108
      %s109 = sphi 0, %s106
      %s110 = sphi 0, %s109
      %s126 = sphi 0, %s110
    $region4: #{tpu_custom_call.1} parent=1 // loop_header_branch
      %15 = sbr.rel (%p13) target = $region8
    $region5: #{tpu_custom_call.1} parent=1 // loop_body
      %s17 = ssub.s32 %s12, 1
      %s18 = ssub.s32 %s12, 2
      %s25 = sadd.s32 1, %s20
      %p26 = scmp.ge.s32.totalorder %s25, 1
      %s27 = scalar_select %p26, 0, %s25
      %s28 = sadd.s32 1, %s19
      %s29 = scalar_select %p26, %s28, %s19
      %p30 = scmp.ge.s32.totalorder %s29, 2
      %s31 = scalar_select %p30, 0, %s29
      %s32 = ssub.s32 %s19, %s31
      %s33 = ssub.s32 %s20, %s27
      %s34 = sor.u32 %s32, %s33
      %p35 = scmp.eq.s32.totalorder %s34, 0
      %s37 = sadd.s32 %s36, 1
      %s38 = scalar_select %p35, %s36, %s37
      %p41 = pneg %p35
      %p42 = scmp.eq.s32.totalorder %s12, 1
      %p43 = por %p41, %p42
      %p44 = scmp.ne.s32.totalorder %s36, %s39
      %p45 = scmp.eq.s32.totalorder %s12, 0
      %p46 = por %p44, %p45
      %p47 = scmp.ne.s32.totalorder %s36, %s39
      %p48 = scmp.eq.s32.totalorder %s17, 1
      %p49 = por %p47, %p48
      %p50 = scmp.ne.s32.totalorder %s39, %s40
      %p51 = scmp.eq.s32.totalorder %s17, 0
      %p52 = por %p50, %p51
      %p53 = scmp.ne.s32.totalorder %s39, %s40
      %p54 = scmp.eq.s32.totalorder %s18, 1
      %p55 = por %p53, %p54
      %p57 = scmp.ne.s32.totalorder %s40, %s56
      %p58 = scmp.eq.s32.totalorder %s18, 0
      %p59 = por %p57, %p58
      %s61 = sadd.s32 %s60, 1
      %p64 = scmp.eq.s32.totalorder %s12, 1
      %p65 = scmp.ne.s32.totalorder %s60, %s62
      %p66 = scmp.eq.s32.totalorder %s12, 0
      %p67 = por %p65, %p66
      %p68 = scmp.ne.s32.totalorder %s60, %s62
      %p69 = scmp.eq.s32.totalorder %s17, 1
      %p70 = por %p68, %p69
      %p71 = scmp.ne.s32.totalorder %s62, %s63
      %p72 = scmp.eq.s32.totalorder %s17, 0
      %p73 = por %p71, %p72
      %p74 = scmp.ne.s32.totalorder %s62, %s63
      %p75 = scmp.eq.s32.totalorder %s18, 1
      %p76 = por %p74, %p75
      %p78 = scmp.ne.s32.totalorder %s63, %s77
      %p79 = scmp.eq.s32.totalorder %s18, 0
      %p80 = por %p78, %p79
      %s82 = sadd.s32 %s81, 1
      %p85 = scmp.eq.s32.totalorder %s12, 1
      %p86 = scmp.ne.s32.totalorder %s81, %s83
      %p87 = scmp.eq.s32.totalorder %s12, 0
      %p88 = por %p86, %p87
      %p89 = scmp.ne.s32.totalorder %s81, %s83
      %p90 = scmp.eq.s32.totalorder %s17, 1
      %p91 = por %p89, %p90
      %p92 = scmp.ne.s32.totalorder %s83, %s84
      %p93 = scmp.eq.s32.totalorder %s17, 0
      %p94 = por %p92, %p93
      %p95 = scmp.ne.s32.totalorder %s83, %s84
      %p96 = scmp.eq.s32.totalorder %s18, 1
      %p97 = por %p95, %p96
      %p99 = scmp.ne.s32.totalorder %s84, %s98
      %p100 = scmp.eq.s32.totalorder %s18, 0
      %p101 = por %p99, %p100
      %s102 = ssub.s32 %s19, %s31
      %s103 = ssub.s32 %s20, %s27
      %s104 = sor.u32 %s102, %s103
      %p105 = scmp.eq.s32.totalorder %s104, 0
      %s107 = sadd.s32 %s106, 1
      %s108 = scalar_select %p105, %s106, %s107
      %p111 = pneg %p105
      %p112 = scmp.eq.s32.totalorder %s12, 1
      %p113 = por %p111, %p112
      %p114 = scmp.ne.s32.totalorder %s106, %s109
      %p115 = scmp.eq.s32.totalorder %s12, 0
      %p116 = por %p114, %p115
      %p117 = scmp.ne.s32.totalorder %s106, %s109
      %p118 = scmp.eq.s32.totalorder %s17, 1
      %p119 = por %p117, %p118
      %p120 = scmp.ne.s32.totalorder %s109, %s110
      %p121 = scmp.eq.s32.totalorder %s17, 0
      %p122 = por %p120, %p121
      %p123 = scmp.ne.s32.totalorder %s109, %s110
      %p124 = scmp.eq.s32.totalorder %s18, 1
      %p125 = por %p123, %p124
      %p127 = scmp.ne.s32.totalorder %s110, %s126
      %p128 = scmp.eq.s32.totalorder %s18, 0
      %p129 = por %p127, %p128
      %p130 = scmp.le.s32.totalorder 1, %s12
      %p131 = scmp.lt.s32.totalorder %s12, 3
      %p132 = pnand %p130, %p131
      %p133 = pneg %p132
      // Predicated region
      $region9: #{tpu_custom_call.1} parent=5 // pred_check
        _
      $region10: #{tpu_custom_call.1} parent=5 // pred_check_branch
        %135 = sbr.rel (%p132) target = $region12
      $region11: #{tpu_custom_call.1} parent=5 // pred_region
        %s136 = ssub.s32 %s12, 1
        // Predicated region
        $region13: #{tpu_custom_call.1} parent=11 // pred_check
          %p137 = pneg %p73
        $region14: #{tpu_custom_call.1} parent=11 // pred_check_branch
          %139 = sbr.rel (%p137) target = $region16
        $region15: #{tpu_custom_call.1} parent=11 // pred_region
          _
        $region16: #{tpu_custom_call.1} parent=11 // pred_fallthru
          _
        // Predicated region
        $region17: #{tpu_custom_call.1} parent=11 // pred_check
          %p140 = pneg %p94
        $region18: #{tpu_custom_call.1} parent=11 // pred_check_branch
          %142 = sbr.rel (%p140) target = $region20
        $region19: #{tpu_custom_call.1} parent=11 // pred_region
          _
        $region20: #{tpu_custom_call.1} parent=11 // pred_fallthru
          _
      $region12: #{tpu_custom_call.1} parent=5 // pred_fallthru
        _
      %p143 = scmp.lt.s32.totalorder %s12, 2
      // Predicated region
      $region21: #{tpu_custom_call.1} parent=5 // pred_check
        %p144 = pneg %p143
      $region22: #{tpu_custom_call.1} parent=5 // pred_check_branch
        %146 = sbr.rel (%p144) target = $region24
      $region23: #{tpu_custom_call.1} parent=5 // pred_region
        // Predicated region
        $region25: #{tpu_custom_call.1} parent=23 // pred_check
          %p147 = pneg %p46
        $region26: #{tpu_custom_call.1} parent=23 // pred_check_branch
          %149 = sbr.rel (%p147) target = $region28
        $region27: #{tpu_custom_call.1} parent=23 // pred_region
          %s150 = smul.u32 12, %s20
          %p151 = scmp.lt.s32.totalorder %s19, 1
          %s152 = scalar_select %p151, %s19, 1
          %p153 = scmp.lt.s32.totalorder %s150, 11
          %s154 = scalar_select %p153, %s150, 11
          %s155 = smul.addr %s152, 12
          %s156 = sadd.s32 %s154, %s155
          %s157 = smul.addr %s156, 4
          %s158 = scalar_lea.vmem %s0, %s157
          %s159 = smul.u32 12, %s20
        $region28: #{tpu_custom_call.1} parent=23 // pred_fallthru
          _
      $region24: #{tpu_custom_call.1} parent=5 // pred_fallthru
        _
      %p160 = scmp.le.s32.totalorder 1, %s12
      %p161 = scmp.lt.s32.totalorder %s12, 3
      %p162 = pnand %p160, %p161
      %p163 = pneg %p162
      // Predicated region
      $region29: #{tpu_custom_call.1} parent=5 // pred_check
        _
      $region30: #{tpu_custom_call.1} parent=5 // pred_check_branch
        %165 = sbr.rel (%p162) target = $region32
      $region31: #{tpu_custom_call.1} parent=5 // pred_region
        %s166 = ssub.s32 %s12, 1
        %s167 = smul.u32 12, %s22
        %p168 = scmp.lt.s32.totalorder %s21, 1
        %s169 = scalar_select %p168, %s21, 1
        %p170 = scmp.lt.s32.totalorder %s167, 11
        %s171 = scalar_select %p170, %s167, 11
        %s172 = smul.addr %s169, 12
        %s173 = sadd.s32 %s171, %s172
        %s174 = smul.addr %s173, 4
        %s175 = scalar_lea.vmem %s0, %s174
        %p176 = pneg %p52
        %p177 = pneg %p49
        %p178 = pneg %p73
        %p179 = pneg %p70
        %p180 = pneg %p94
        %p181 = pneg %p91
        %p182 = pneg %p122
        %p183 = pneg %p119
        %s184 = sand.u32 %s109, 1
        %s185 = scalar_lea.sflag [#allocation3], %s184
        %s186 = sand.u32 %s109, 1
        %s187 = smul.addr %s186, 96
        %s188 = scalar_lea.vmem [#allocation2], %s187
        %s189 = smul.u32 12, %s22
        %p190 = scmp.lt.s32.totalorder %s21, 1
        %s191 = scalar_select %p190, %s21, 1
        %p192 = scmp.lt.s32.totalorder %s189, 11
        %s193 = scalar_select %p192, %s189, 11
        %s194 = smul.addr %s191, 12
        %s195 = sadd.s32 %s193, %s194
        %s196 = smul.addr %s195, 4
        %s197 = scalar_lea.vmem %s0, %s196
        %s198 = smul.u32 12, %s22
        %s199 = smul.u32 12, %s22
        %v201 = vld [vmem:[%s197] sm:$0xf]
        %v202 = vld [vmem:[%s197 + $0x4] sm:$0xf]
        %v203 = vld [vmem:[%s197 + $0x8] sm:$0xf]
        %v204 = vld [vmem:[%s197 + $0xc] sm:$0xf]
        %v205 = vld [vmem:[%s197 + $0x10] sm:$0xf]
        %v206 = vld [vmem:[%s197 + $0x14] sm:$0xf]
        %v207 = vld [vmem:[%s197 + $0x18] sm:$0xf]
        %v208 = vld [vmem:[%s197 + $0x1c] sm:$0xf]
        %v209 = vld [vmem:[%s197 + $0x20] sm:$0xf]
        %v210 = vld [vmem:[%s197 + $0x24] sm:$0xf]
        %v211 = vld [vmem:[%s197 + $0x28] sm:$0xf]
        %v212 = vld [vmem:[%s197 + $0x2c] sm:$0xf]
        %v213 = vld [vmem:[%s1] sm:$0xf]
        %v214 = vld [vmem:[%s1 + $0x4] sm:$0xf]
        %v215 = vld [vmem:[%s1 + $0x8] sm:$0xf]
        %v216 = vld [vmem:[%s1 + $0xc] sm:$0xf]
        %v217 = vld [vmem:[%s1 + $0x10] sm:$0xf]
        %v218 = vld [vmem:[%s1 + $0x14] sm:$0xf]
        %v219 = vld [vmem:[%s1 + $0x18] sm:$0xf]
        %v220 = vld [vmem:[%s1 + $0x1c] sm:$0xf]
        %v221 = vld [vmem:[%s2] sm:$0x1]
        %v223 = vlaneseq
        %v224 = vshrl.u32 %v223, 7
        %v225 = vsub.s32 0, %v224
        %v226 = vrot.slane %v221, %v225
        %v240 = vunpack.c.l.b16 %v201
        %v241 = vunpack.c.l.b16 %v202
        %v242 = vunpack.c.l.b16 %v203
        %v243 = vunpack.c.l.b16 %v204
        %v244 = vunpack.c.l.b16 %v205
        %v245 = vunpack.c.l.b16 %v206
        %v246 = vunpack.c.l.b16 %v207
        %v247 = vunpack.c.l.b16 %v208
        %v248 = vunpack.c.l.b16 %v209
        %v249 = vunpack.c.l.b16 %v210
        %v250 = vunpack.c.l.b16 %v211
        %v251 = vunpack.c.l.b16 %v212
        %v252 = vpack.c.b16 %v241, %v240
        %v253 = vpack.c.b16 %v243, %v242
        %v254 = vpack.c.b16 %v245, %v244
        %v255 = vpack.c.b16 %v247, %v246
        %v256 = vpack.c.b16 %v249, %v248
        %v257 = vpack.c.b16 %v251, %v250
        %v266 = vunpack.c.l.b16 %v213
        %v267 = vunpack.c.l.b16 %v214
        %v268 = vunpack.c.l.b16 %v215
        %v269 = vunpack.c.l.b16 %v216
        %v270 = vunpack.c.l.b16 %v217
        %v271 = vunpack.c.l.b16 %v218
        %v272 = vunpack.c.l.b16 %v219
        %v273 = vunpack.c.l.b16 %v220
        %v274 = vpack.c.b16 %v267, %v266
        %v275 = vpack.c.b16 %v269, %v268
        %v276 = vpack.c.b16 %v271, %v270
        %v277 = vpack.c.b16 %v273, %v272
        %vm282 = vcmask 523264
        %v284 = vsel %vm282, %v252, 0
        %v287 = vsel %vm282, %v253, 0
        %v290 = vsel %vm282, %v254, 0
        %v293 = vsel %vm282, %v255, 0
        %v296 = vsel %vm282, %v256, 0
        %v299 = vsel %vm282, %v257, 0
        %301 = vmatprep.subr.bf16.mxu0 0
        %302 = vmatpush1.bf16.msra.mxu0 0
        %303 = vmatprep.subr.bf16.mxu0 0
        %304 = vmatpush1.bf16.msra.mxu0 0
        %305 = vmatprep.subr.bf16.mxu0 0
        %306 = vmatpush1.bf16.msra.mxu0 0
        %307 = vmatprep.subr.bf16.mxu0 0
        %308 = vmatpush1.bf16.msra.mxu0 0
        %309 = vmatprep.subr.bf16.mxu0 0
        %310 = vmatpush1.bf16.msra.mxu0 %v277
        %311 = vmatprep.subr.bf16.mxu0 0
        %312 = vmatpush1.bf16.msra.mxu0 %v276
        %313 = vmatprep.subr.bf16.mxu0 0
        %314 = vmatpush1.bf16.msra.mxu0 %v275
        %315 = vmatprep.subr.bf16.mxu0 0
        %316 = vmatpush1.bf16.msra.mxu0 %v274
        %317 = vmatprep.subr.bf16.mxu0 0
        %318 = vmatpush2.bf16.msra.mxu0 0
        %319 = vmatprep.subr.bf16.mxu0 0
        %320 = vmatpush2.bf16.msra.mxu0 0
        %321 = vmatprep.subr.bf16.mxu0 0
        %322 = vmatpush2.bf16.msra.mxu0 0
        %323 = vmatprep.subr.bf16.mxu0 0
        %324 = vmatpush2.bf16.msra.mxu0 0
        %325 = vmatprep.subr.bf16.mxu0 0
        %326 = vmatpush2.bf16.msra.mxu0 0
        %327 = vmatprep.subr.bf16.mxu0 0
        %328 = vmatpush2.bf16.msra.mxu0 0
        %329 = vmatprep.subr.bf16.mxu0 0
        %330 = vmatpush2.bf16.msra.mxu0 0
        %331 = vmatprep.subr.bf16.mxu0 0
        %332 = vmatpush2.bf16.msra.mxu0 0
        %333 = vmatprep.mubr.bf16.mxu0 0
        %334 = vmatmul.mubr.bf16.gmra.mxu0 %v284
        %v335 = vpop.f32.mrf.mxu0
        %v336 = vadd.f32 %v226, %v335
        %v337 = vpop.f32.mrf.mxu0
        %v338 = vpop.f32.mrf.mxu0
        %v339 = vadd.f32 %v226, %v338
        %v340 = vpop.f32.mrf.mxu0
        %341 = vmatprep.mubr.bf16.mxu0 0
        %342 = vmatmul.mubr.bf16.gmra.mxu0 %v287
        %v343 = vpop.f32.mrf.mxu0
        %v344 = vadd.f32 %v226, %v343
        %v345 = vpop.f32.mrf.mxu0
        %v346 = vpop.f32.mrf.mxu0
        %v347 = vadd.f32 %v226, %v346
        %v348 = vpop.f32.mrf.mxu0
        %349 = vmatprep.mubr.bf16.mxu0 0
        %350 = vmatmul.mubr.bf16.gmra.mxu0 %v290
        %v351 = vpop.f32.mrf.mxu0
        %v352 = vadd.f32 %v226, %v351
        %v353 = vpop.f32.mrf.mxu0
        %v354 = vpop.f32.mrf.mxu0
        %v355 = vadd.f32 %v226, %v354
        %v356 = vpop.f32.mrf.mxu0
        %357 = vmatprep.mubr.bf16.mxu0 0
        %358 = vmatmul.mubr.bf16.gmra.mxu0 %v293
        %v359 = vpop.f32.mrf.mxu0
        %v360 = vadd.f32 %v226, %v359
        %v361 = vpop.f32.mrf.mxu0
        %v362 = vpop.f32.mrf.mxu0
        %v363 = vadd.f32 %v226, %v362
        %v364 = vpop.f32.mrf.mxu0
        %365 = vmatprep.mubr.bf16.mxu0 0
        %366 = vmatmul.mubr.bf16.gmra.mxu0 %v296
        %v367 = vpop.f32.mrf.mxu0
        %v368 = vadd.f32 %v226, %v367
        %v369 = vpop.f32.mrf.mxu0
        %v370 = vpop.f32.mrf.mxu0
        %v371 = vadd.f32 %v226, %v370
        %v372 = vpop.f32.mrf.mxu0
        %373 = vmatprep.mubr.bf16.mxu0 0
        %374 = vmatmul.mubr.bf16.gmra.mxu0 %v299
        %v375 = vpop.f32.mrf.mxu0
        %v376 = vadd.f32 %v226, %v375
        %v377 = vpop.f32.mrf.mxu0
        %v378 = vpop.f32.mrf.mxu0
        %v379 = vadd.f32 %v226, %v378
        %v380 = vpop.f32.mrf.mxu0
        %381 = vdwg.mxu0
        %vm382 = vcmp.gt.f32.partialorder %v336, 0.0
        %vm383 = vcmp.gt.f32.partialorder %v339, 0.0
        %vm384 = vcmp.gt.f32.partialorder %v344, 0.0
        %vm385 = vcmp.gt.f32.partialorder %v347, 0.0
        %vm386 = vcmp.gt.f32.partialorder %v352, 0.0
        %vm387 = vcmp.gt.f32.partialorder %v355, 0.0
        %vm388 = vcmp.gt.f32.partialorder %v360, 0.0
        %vm389 = vcmp.gt.f32.partialorder %v363, 0.0
        %vm390 = vcmp.gt.f32.partialorder %v368, 0.0
        %vm391 = vcmp.gt.f32.partialorder %v371, 0.0
        %vm392 = vcmp.gt.f32.partialorder %v376, 0.0
        %vm393 = vcmp.gt.f32.partialorder %v379, 0.0
        %v394 = vmul.f32 %v336, 0.2
        %v395 = vmul.f32 %v339, 0.2
        %v396 = vmul.f32 %v344, 0.2
        %v397 = vmul.f32 %v347, 0.2
        %v398 = vmul.f32 %v352, 0.2
        %v399 = vmul.f32 %v355, 0.2
        %v400 = vmul.f32 %v360, 0.2
        %v401 = vmul.f32 %v363, 0.2
        %v402 = vmul.f32 %v368, 0.2
        %v403 = vmul.f32 %v371, 0.2
        %v404 = vmul.f32 %v376, 0.2
        %v405 = vmul.f32 %v379, 0.2
        %v406 = vsel %vm382, %v336, %v394
        %v407 = vsel %vm383, %v339, %v395
        %v408 = vsel %vm384, %v344, %v396
        %v409 = vsel %vm385, %v347, %v397
        %v410 = vsel %vm386, %v352, %v398
        %v411 = vsel %vm387, %v355, %v399
        %v412 = vsel %vm388, %v360, %v400
        %v413 = vsel %vm389, %v363, %v401
        %v414 = vsel %vm390, %v368, %v402
        %v415 = vsel %vm391, %v371, %v403
        %v416 = vsel %vm392, %v376, %v404
        %v417 = vsel %vm393, %v379, %v405
        %418 = vst [vmem:[%s188] sm:$0xff] %v406
        %419 = vst [vmem:[%s188 + $0x8] sm:$0xff] %v407
        %420 = vst [vmem:[%s188 + $0x10] sm:$0xff] %v408
        %421 = vst [vmem:[%s188 + $0x18] sm:$0xff] %v409
        %422 = vst [vmem:[%s188 + $0x20] sm:$0xff] %v410
        %423 = vst [vmem:[%s188 + $0x28] sm:$0xff] %v411
        %424 = vst [vmem:[%s188 + $0x30] sm:$0xff] %v412
        %425 = vst [vmem:[%s188 + $0x38] sm:$0xff] %v413
        %426 = vst [vmem:[%s188 + $0x40] sm:$0xff] %v414
        %427 = vst [vmem:[%s188 + $0x48] sm:$0xff] %v415
        %428 = vst [vmem:[%s188 + $0x50] sm:$0xff] %v416
        %429 = vst [vmem:[%s188 + $0x58] sm:$0xff] %v417
        %s430 = sand.u32 %s109, 1
        %s431 = scalar_lea.sflag [#allocation3], %s430
        %s432 = sand.u32 %s109, 1
        %s433 = smul.addr %s432, 96
        %s434 = scalar_lea.vmem [#allocation2], %s433
        // Predicated region
        $region33: #{tpu_custom_call.1} parent=31 // pred_check
          %p435 = pneg %p119
        $region34: #{tpu_custom_call.1} parent=31 // pred_check_branch
          %437 = sbr.rel (%p435) target = $region36
        $region35: #{tpu_custom_call.1} parent=31 // pred_region
          %s438 = smul.u32 12, %s22
          %s440 = ssub.s32 1536, 1536
          %441 = vsyncadd %s431, %s440
          %s442 = smul.addr %s21, 12
          %s443 = sadd.s32 %s438, %s442
          %s444 = smul.addr %s443, 128
          %s445 = scalar_lea.hbm %s3, %s444
          %s446 = sshll.u32 %s434, 4
          %s447 = int_to_ptr.vmem [resolvable:$true] %s446
          %452 = dma.vmem_to_hbm [thread:$0]  %s447, 1536, %s445, %s431, 128, 128, 8
        $region36: #{tpu_custom_call.1} parent=31 // pred_fallthru
          _
      $region32: #{tpu_custom_call.1} parent=5 // pred_fallthru
        _
      %p453 = scmp.le.s32.totalorder 2, %s12
      // Predicated region
      $region37: #{tpu_custom_call.1} parent=5 // pred_check
        %p454 = pneg %p453
      $region38: #{tpu_custom_call.1} parent=5 // pred_check_branch
        %456 = sbr.rel (%p454) target = $region40
      $region39: #{tpu_custom_call.1} parent=5 // pred_region
        %s457 = ssub.s32 %s12, 2
        // Predicated region
        $region41: #{tpu_custom_call.1} parent=39 // pred_check
          %p458 = pneg %p125
        $region42: #{tpu_custom_call.1} parent=39 // pred_check_branch
          %460 = sbr.rel (%p458) target = $region44
        $region43: #{tpu_custom_call.1} parent=39 // pred_region
          %s461 = sand.u32 %s110, 1
          %s462 = scalar_lea.sflag [#allocation3], %s461
          %s463 = sand.u32 %s110, 1
          %s464 = smul.addr %s463, 96
          %s465 = scalar_lea.vmem [#allocation2], %s464
          %466 = dma.done %s462, 1536
        $region44: #{tpu_custom_call.1} parent=39 // pred_fallthru
          _
      $region40: #{tpu_custom_call.1} parent=5 // pred_fallthru
        _
    $region6: #{tpu_custom_call.1} parent=1 // loop_footer
      %s16 = sadd.s32 1, %s12
    $region7: #{tpu_custom_call.1} parent=1 // loop_footer_branch
      %11 = sbr.rel target = $region3
    $region8: #{tpu_custom_call.1} parent=1 // loop_exit
      _
    %467 = vsyncpa [#allocation3], 1
    %s468 = scalar_lea.sflag [#allocation3], 1
    %469 = vsyncpa %s468, 1

</llo_original>
